<compile_context>
chip_gen: v5e
topology: v5e:2x2
jax: 0.10.0
libtpu: 0.0.40
codegen_flags: <defaults>
</compile_context>

<pallas_src>
import functools

import jax
import jax.numpy as jnp
from jax import lax
from jax.experimental import pallas as pl
from jax.experimental.pallas import tpu as pltpu

GAMMA = 2  # module default


def _weighted_ce_kernel(inp_ref, tgt_ref, out_ref, *, n_total, gamma):
    i = pl.program_id(0)

    x = inp_ref[...].astype(jnp.float32)          # (TN, C) upcast in-vreg
    tgt = tgt_ref[...]                            # (TN, 1) int32
    tn, c = x.shape

    # Mask padded rows of a partial last block (N not a multiple of TN).
    row_ids = i * tn + lax.broadcasted_iota(jnp.int32, (tn, 1), 0)
    valid = row_ids < n_total                     # (TN, 1) bool

    # Numerically stable log-softmax pieces along the class (lane) axis.
    m = jnp.max(x, axis=1, keepdims=True)         # (TN, 1)
    z = x - m
    lse = jnp.log(jnp.sum(jnp.exp(z), axis=1, keepdims=True))   # (TN, 1)

    # Gather the shifted logit at the target class with a vectorized one-hot
    # compare+select (stays on the VPU; no scalar loop).
    col_ids = lax.broadcasted_iota(jnp.int32, (tn, c), 1)
    z_t = jnp.sum(jnp.where(col_ids == tgt, z, 0.0), axis=1, keepdims=True)

    # Only the target column of `weighted` is ever used, so all focal-weight
    # math is (TN, 1) instead of (TN, C).
    logp_t = z_t - lse                            # log_softmax[i, target[i]]
    p_t = jnp.exp(logp_t)                         # softmax[i, target[i]]
    one_minus = 1.0 - p_t
    if gamma == 2:                                # static python value; module default
        w = one_minus * one_minus                 # two VPU multiplies, no pow
    else:
        w = one_minus ** gamma
    picked = w * logp_t                           # focal-weighted log-prob
    # NOTE: keep this a select, NOT `picked * valid` (NaN*0 from padded rows
    # would leak into the partial sum).
    picked = jnp.where(valid, picked, 0.0)

    # Per-block partial sum, broadcast into a lane-dense (1, 8, 128) tile so
    # the store is an unmasked vst and the grid axis can be fully parallel.
    s = jnp.sum(picked)                           # scalar f32
    out_ref[...] = s + jnp.zeros_like(out_ref)


def _vmem_budgets():
    """(tile_budget_bytes, vmem_limit_bytes), generation-aware."""
    cap = None
    try:
        info = pltpu.get_tpu_info()
        cap = getattr(info, "vmem_capacity_bytes", None)
    except Exception:
        cap = None
    if not cap:
        cap = 64 * 1024 * 1024   # conservative fallback: v7x per-TensorCore VMEM
    tile_budget = int(cap * 0.60)   # estimated in-flight footprint target
    vmem_limit = int(cap * 0.90)    # scoped VMEM limit handed to Mosaic
    return tile_budget, vmem_limit


def _pick_row_tile(n, c, itemsize, budget):
    """Largest row tile whose full in-flight footprint fits `budget` bytes."""
    # Sub-32-bit dtypes pack along sublanes: (8,128) f32, (16,128) bf16,
    # (32,128) int8/fp8 -> round the tile to the packing granularity.
    pack = max(8, 32 // max(1, itemsize))
    # Per-row bytes:
    #   2 x (TN, C) input buffers (double-buffered DMA)        : 2*C*itemsize
    #   ~4 full-width f32/int32 temps (x, z, exp(z), col iota)  : 16*C
    #   2 x (TN, 1) int32 target buffers + slack                : ~40
    per_row = 2 * c * itemsize + 16 * c + 40
    rows = budget // max(1, per_row)
    rows = (rows // pack) * pack
    if rows <= 0:
        rows = pack
    if n <= rows:
        return n              # single block; full-array block dims always legal
    return rows               # multiple of `pack` (>= 8) -> legal partial tiling


def weighted_cross_entropy(inp, target, gamma=GAMMA, row_tile=None):
    """inp: (N, C) float (f32/bf16), target: (N,) int -> scalar f32 loss."""
    n, c = inp.shape
    tgt2d = target.astype(jnp.int32).reshape(n, 1)

    tile_budget, vmem_limit = _vmem_budgets()
    itemsize = jnp.dtype(inp.dtype).itemsize
    tn = row_tile if row_tile is not None else _pick_row_tile(n, c, itemsize, tile_budget)
    grid_n = pl.cdiv(n, tn)

    kernel = functools.partial(_weighted_ce_kernel, n_total=n, gamma=gamma)

    partials = pl.pallas_call(
        kernel,
        out_shape=jax.ShapeDtypeStruct((grid_n, 8, 128), jnp.float32),
        grid_spec=pltpu.PrefetchScalarGridSpec(
            num_scalar_prefetch=0,
            grid=(grid_n,),
            in_specs=[
                pl.BlockSpec((tn, c), lambda i: (i, 0)),
                pl.BlockSpec((tn, 1), lambda i: (i, 0)),
            ],
            out_specs=pl.BlockSpec((1, 8, 128), lambda i: (i, 0, 0)),
        ),
        compiler_params=pltpu.CompilerParams(
            # No cross-step state: independent per-block partials -> v7x can
            # shard the batch axis across its two TensorCores.
            dimension_semantics=("parallel",),
            vmem_limit_bytes=vmem_limit,
        ),
    )(inp, tgt2d)

    # Final reduction over the (tiny) per-block partials in plain XLA.
    return -jnp.sum(partials[:, 0, 0]) / jnp.float32(n)


def _reference(inp, target, gamma=GAMMA):
    # pure-JAX reference of the PyTorch forward
    x = inp.astype(jnp.float32)
    logp = jax.nn.log_softmax(x, axis=1)
    p = jax.nn.softmax(x, axis=1)
    weighted = ((1.0 - p) ** gamma) * logp
    picked = jnp.take_along_axis(weighted, target[:, None], axis=1)[:, 0]
    return -jnp.mean(picked)


if __name__ == "__main__":
    key = jax.random.PRNGKey(0)
    k1, k2, k3, k4, k5, k6 = jax.random.split(key, 6)

    # Small shape consistent with the module: (batch=8, classes=32), f32.
    N, C = 8, 32
    inp = jax.random.normal(k1, (N, C), dtype=jnp.float32)
    target = jax.random.randint(k2, (N,), 0, C, dtype=jnp.int32)

    loss = jax.block_until_ready(weighted_cross_entropy(inp, target))
    ref = _reference(inp, target)
    assert jnp.allclose(loss, ref, rtol=1e-5, atol=1e-5), (loss, ref)

    # bf16 input, larger N: exercises the auto-sized tile path + upcast.
    N2, C2 = 1200, 64
    inp2 = jax.random.normal(k3, (N2, C2), dtype=jnp.bfloat16)
    target2 = jax.random.randint(k4, (N2,), 0, C2, dtype=jnp.int32)

    loss2 = jax.block_until_ready(weighted_cross_entropy(inp2, target2))
    ref2 = _reference(inp2, target2)
    assert jnp.allclose(loss2, ref2, rtol=1e-4, atol=1e-5), (loss2, ref2)

    # Forced small row tile: exercises the multi-block parallel-partials path,
    # pipelined DMA and padded-row masking of a partial last block (300 = 2*128 + 44).
    N3, C3 = 300, 128
    inp3 = jax.random.normal(k5, (N3, C3), dtype=jnp.float32)
    target3 = jax.random.randint(k6, (N3,), 0, C3, dtype=jnp.int32)

    loss3 = jax.block_until_ready(weighted_cross_entropy(inp3, target3, row_tile=128))
    ref3 = _reference(inp3, target3)
    assert jnp.allclose(loss3, ref3, rtol=1e-5, atol=1e-5), (loss3, ref3)

    print("KERNEL_OK")
</pallas_src>

<mosaic_0001>
module attributes {stable_mosaic.version = 11 : i64} {
  func.func @_weighted_ce_kernel(%arg0: i32, %arg1: memref<8x32xf32, #tpu.memory_space<vmem>>, %arg2: memref<8x1xi32, #tpu.memory_space<vmem>>, %arg3: memref<1x8x128xf32, #tpu.memory_space<vmem>>) attributes {dimension_semantics = [#tpu.dimension_semantics<parallel>], iteration_bounds = array<i64: 1>, scalar_prefetch = 0 : i64, scratch_operands = 0 : i64, tpu.core_type = #tpu.core_type<tc>, window_params = [{transform_indices = @transform_0, window_bounds = array<i64: 8, 32>}, {transform_indices = @transform_1, window_bounds = array<i64: 8, 1>}, {transform_indices = @transform_2, window_bounds = array<i64: 1, 8, 128>}]} {
    %c0 = arith.constant 0 : index
    %c0_0 = arith.constant 0 : index
    %0 = vector.load %arg1[%c0, %c0_0] : memref<8x32xf32, #tpu.memory_space<vmem>>, vector<8x32xf32>
    %c0_1 = arith.constant 0 : index
    %c0_2 = arith.constant 0 : index
    %1 = vector.load %arg2[%c0_1, %c0_2] : memref<8x1xi32, #tpu.memory_space<vmem>>, vector<8x1xi32>
    %c8_i32 = arith.constant 8 : i32
    %2 = arith.muli %arg0, %c8_i32 : i32
    %3 = tpu.iota {dimensions = array<i32: 0>} : vector<8x1xi32>
    %4 = vector.broadcast %2 : i32 to vector<8x1xi32>
    %5 = arith.addi %4, %3 : vector<8x1xi32>
    %c8_i32_3 = arith.constant 8 : i32
    %6 = vector.broadcast %c8_i32_3 : i32 to vector<8x1xi32>
    %7 = arith.cmpi slt, %5, %6 : vector<8x1xi32>
    %cst = arith.constant dense<0xFF800000> : vector<8xf32>
    %8 = vector.multi_reduction <maximumf>, %0, %cst [1] : vector<8x32xf32> to vector<8xf32>
    %9 = vector.shape_cast %8 : vector<8xf32> to vector<8x1xf32>
    %10 = vector.broadcast %9 : vector<8x1xf32> to vector<8x32xf32>
    %11 = arith.subf %0, %10 : vector<8x32xf32>
    %12 = math.exp %11 : vector<8x32xf32>
    %cst_4 = arith.constant dense<0.000000e+00> : vector<8xf32>
    %13 = vector.multi_reduction <add>, %12, %cst_4 [1] : vector<8x32xf32> to vector<8xf32>
    %14 = vector.shape_cast %13 : vector<8xf32> to vector<8x1xf32>
    %15 = math.log %14 : vector<8x1xf32>
    %16 = tpu.iota {dimensions = array<i32: 1>} : vector<8x32xi32>
    %17 = vector.broadcast %1 : vector<8x1xi32> to vector<8x32xi32>
    %18 = arith.cmpi eq, %16, %17 : vector<8x32xi32>
    %cst_5 = arith.constant 0.000000e+00 : f32
    %19 = vector.broadcast %cst_5 : f32 to vector<8x32xf32>
    %20 = arith.select %18, %11, %19 : vector<8x32xi1>, vector<8x32xf32>
    %cst_6 = arith.constant dense<0.000000e+00> : vector<8xf32>
    %21 = vector.multi_reduction <add>, %20, %cst_6 [1] : vector<8x32xf32> to vector<8xf32>
    %22 = vector.shape_cast %21 : vector<8xf32> to vector<8x1xf32>
    %23 = arith.subf %22, %15 : vector<8x1xf32>
    %24 = math.exp %23 : vector<8x1xf32>
    %cst_7 = arith.constant 1.000000e+00 : f32
    %25 = vector.broadcast %cst_7 : f32 to vector<8x1xf32>
    %26 = arith.subf %25, %24 : vector<8x1xf32>
    %27 = arith.mulf %26, %26 : vector<8x1xf32>
    %28 = arith.mulf %27, %23 : vector<8x1xf32>
    %cst_8 = arith.constant 0.000000e+00 : f32
    %29 = vector.broadcast %cst_8 : f32 to vector<8x1xf32>
    %30 = arith.select %7, %28, %29 : vector<8x1xi1>, vector<8x1xf32>
    %31 = vector.shape_cast %30 : vector<8x1xf32> to vector<1x8x1xf32>
    %cst_9 = arith.constant dense<0.000000e+00> : vector<1xf32>
    %32 = vector.multi_reduction <add>, %31, %cst_9 [1, 2] : vector<1x8x1xf32> to vector<1xf32>
    %33 = vector.shape_cast %32 : vector<1xf32> to vector<1x1x1xf32>
    %34 = vector.extract %33[0, 0, 0] : f32 from vector<1x1x1xf32>
    %cst_10 = arith.constant 0.000000e+00 : f32
    %35 = vector.broadcast %cst_10 : f32 to vector<1x8x128xf32>
    %36 = vector.broadcast %34 : f32 to vector<1x8x128xf32>
    %37 = arith.addf %36, %35 : vector<1x8x128xf32>
    %c0_11 = arith.constant 0 : index
    %c0_12 = arith.constant 0 : index
    %c0_13 = arith.constant 0 : index
    %38 = vector.load %arg3[%c0_11, %c0_12, %c0_13] : memref<1x8x128xf32, #tpu.memory_space<vmem>>, vector<1x8x128xf32>
    tpu.vector_store %arg3[%c0_11, %c0_12, %c0_13], %37 {strides = array<i32>} : memref<1x8x128xf32, #tpu.memory_space<vmem>>, vector<1x8x128xf32>,
    return
  }
  func.func @transform_0(%arg0: i32) -> (i32, i32) {
    %c0_i32 = arith.constant 0 : i32
    %c0_i32_0 = arith.constant 0 : i32
    return %arg0, %c0_i32 : i32, i32
  }
  func.func @transform_1(%arg0: i32) -> (i32, i32) {
    %c0_i32 = arith.constant 0 : i32
    %c0_i32_0 = arith.constant 0 : i32
    return %arg0, %c0_i32 : i32, i32
  }
  func.func @transform_2(%arg0: i32) -> (i32, i32, i32) {
    %c0_i32 = arith.constant 0 : i32
    %c0_i32_0 = arith.constant 0 : i32
    %c0_i32_1 = arith.constant 0 : i32
    return %arg0, %c0_i32, %c0_i32_0 : i32, i32, i32
  }
}

</mosaic_0001>

<llo_original>
// kernel: tpu_custom_call.1
$region0: #{tpu_custom_call.1}
  #allocation0 [shape = 'u32[]', space=smem, size = 0x4, offset = 0x4, fixed_abs, tag = 'smem constant byte address 0x4 - core index']
  #allocation1 [shape = 'u32[72,128]{1,0:T(1,128)}', space=vmem, size = 0x9000, scoped, tag = 'internal scratch']
  %s0 = inlined_call_operand.vmem [shape: f32[8,32], index: 0, kind: input, shape index: {}]
  %s1 = inlined_call_operand.vmem [shape: s32[8,1], index: 1, kind: input, shape index: {}]
  %s2 = inlined_call_operand.hbm [shape: f32[1,8,128], index: 2, kind: output, shape index: {}]
  %s3 = sld [smem:[#allocation0]]
  $region18: #{tpu_custom_call.1} parent=0
    _
  %s5 = ssub.s32 1, %s3
  %s6 = scalar_select 0, %s5, %s3
  $region1: #{tpu_custom_call.1} parent=0
    #allocation2 [shape = 'u8[4096]{0}', space=vmem, size = 0x1000, scoped, tag = 'output window, operand 0, single buffered']
    #allocation3 [shape = 's32[1]{0}', space=sflag, size = 0x4, scoped, tag = 'scoped memory for tpu_custom_call.1']
    %7 = vsyncpa [#allocation3], 0
    // Predicated region
    $region2: #{tpu_custom_call.1} parent=1 // pred_check
      _
    $region3: #{tpu_custom_call.1} parent=1 // pred_check_branch
      %9 = sbr.rel (0) target = $region5
    $region4: #{tpu_custom_call.1} parent=1 // pred_region
      _
    $region5: #{tpu_custom_call.1} parent=1 // pred_fallthru
      _
    // Predicated region
    $region6: #{tpu_custom_call.1} parent=1 // pred_check
      _
    $region7: #{tpu_custom_call.1} parent=1 // pred_check_branch
      %11 = sbr.rel (0) target = $region9
    $region8: #{tpu_custom_call.1} parent=1 // pred_region
      _
    $region9: #{tpu_custom_call.1} parent=1 // pred_fallthru
      _
    %v12 = vld [vmem:[%s0] sm:$0xff]
    %v13 = vld [vmem:[%s1] sm:$0xff]
    %s14 = smul.u32 0, 8
    %v15 = vlaneseq
    %v16 = vshrl.u32 %v15, 7
    %v17 = vstv %s14
    %v18 = vadd.s32 %v17, %v16
    %vm19 = vcmp.lt.s32.totalorder %v18, 8
    %vm20 = vcmask 261120
    %v21 = vsel %vm20, %v12, -inf
    %22 = vmax.xlane.f32.xlu0 %v21
    %v23 = vpop.xlane.xlu0 %22
    %v24 = vsub.f32 %v12, %v23
    %v25 = vmul.f32 %v24, 1.442695
    %v26 = vpow.pop %v25
    %v27 = vsel %vm20, %v26, 0.0
    %28 = vadd.xlane.f32.xlu0 %v27
    %v29 = vpop.xlane.xlu0 %28
    %v30 = vlog2.pop %v29
    %v31 = vmul.f32 %v30, 0.6931472
    %v32 = vlaneseq
    %v33 = vand.u32 %v32, 127
    %34 = vset.pattern.permute.xlu0 0
    %35 = vperm.xlu0 %34, %v13
    %v36 = vpop.permute.xlu0 %35
    %vm37 = vcmp.eq.s32.totalorder %v33, %v36
    %v38 = vsel %vm37, %v24, 0.0
    %v39 = vsel %vm20, %v38, 0.0
    %40 = vadd.xlane.f32.xlu0 %v39
    %v41 = vpop.xlane.xlu0 %40
    %v42 = vsub.f32 %v41, %v31
    %v43 = vmul.f32 %v42, 1.442695
    %v44 = vpow.pop %v43
    %v45 = vsub.f32 1.0, %v44
    %v46 = vmul.f32 %v45, %v45
    %v47 = vmul.f32 %v46, %v42
    %v48 = vsel %vm19, %v47, 0.0
    %vm49 = vcmask 7168
    %v50 = vsel %vm49, %v48, 0.0
    %51 = vadd.xlane.f32.xlu0 %v50
    %v52 = vpop.xlane.xlu0 %51
    %v53 = vrot.slane %v52, 4
    %v54 = vadd.f32 %v52, %v53
    %v55 = vrot.slane %v54, 2
    %v56 = vadd.f32 %v54, %v55
    %v57 = vrot.slane %v56, 1
    %v58 = vadd.f32 %v56, %v57
    %s59 = vtos %v58
    %v60 = vstv %s59
    %v61 = vadd.f32 %v60, 0.0
    %62 = vst [vmem:[#allocation2] sm:$0xff] %v61
    // Predicated region
    $region10: #{tpu_custom_call.1} parent=1 // pred_check
      _
    $region11: #{tpu_custom_call.1} parent=1 // pred_check_branch
      %64 = sbr.rel (0) target = $region13
    $region12: #{tpu_custom_call.1} parent=1 // pred_region
      %66 = vsyncadd [#allocation3], 0
      %s68 = sshll.u32 [#allocation2], 4
      %s69 = int_to_ptr.vmem [resolvable:$true] %s68
      %s70 = sshll.u32 %s2, 4
      %s71 = int_to_ptr.hbm [resolvable:$true] %s70
      %73 = dma.vmem_to_hbm [thread:$0]  %s69, 128, %s71, [#allocation3]
    $region13: #{tpu_custom_call.1} parent=1 // pred_fallthru
      _
    // Predicated region
    $region14: #{tpu_custom_call.1} parent=1 // pred_check
      _
    $region15: #{tpu_custom_call.1} parent=1 // pred_check_branch
      %75 = sbr.rel (0) target = $region17
    $region16: #{tpu_custom_call.1} parent=1 // pred_region
      %77 = dma.done [#allocation3], 128
    $region17: #{tpu_custom_call.1} parent=1 // pred_fallthru
      _
    %78 = vsyncpa [#allocation3], 1

</llo_original>
